<compile_context>
chip_gen: v7x
topology: tpu7x:2x2x1
jax: 0.10.0
libtpu: 0.0.40
codegen_flags: <defaults>
</compile_context>

<pallas_src>
import functools

import jax
import jax.numpy as jnp
from jax import lax
from jax.experimental import pallas as pl
from jax.experimental.pallas import tpu as pltpu


def _triplet_loss_kernel(x_ref, t_ref, o_ref, *, margin):
    x = x_ref[...].astype(jnp.float32)            # (n, d) — cast in-kernel
    t_col = t_ref[...]                            # (1, n) int32 labels
    n = x.shape[0]

    # 1) L2-normalize each row (matches torch.norm(..., 2, dim=-1) + 1e-12).
    #    (n,1) reciprocal + broadcast multiply: n EUP pushes instead of n*d.
    norm = jnp.sqrt(jnp.sum(x * x, axis=-1, keepdims=True))           # (n, 1)
    inv_norm = pl.reciprocal(norm + 1e-12, approx=False)              # (n, 1)
    x = x * inv_norm

    # 2) Pairwise SQUARED euclidean distances. Rows are unit-norm, so
    #    d2 = ||xi||^2 + ||xj||^2 - 2 xi.xj ≈ 2 - 2*gram (delta ~1e-7 vs the
    #    sq + sq.T form of the reference). Contract dim 1 of both operands so
    #    Mosaic feeds the MXU without materializing x.T.
    gram = lax.dot_general(
        x, x,
        dimension_numbers=(((1,), (1,)), ((), ())),
        preferred_element_type=jnp.float32,
    )                                                                 # (n, n)
    d2 = 2.0 - 2.0 * gram                                             # (n, n)

    # 3) Same-label mask; the (n,1) label view is one int32 XLU transpose of
    #    the single (1,n) input (no second label DMA stream).
    t_row = jnp.transpose(t_col)                                      # (n, 1)
    mask = (t_row == t_col)                                           # (n, n)

    # Early-exit gates of the PyTorch code (return 0.0), derived from mask
    # row-sums (diagonal always counts 1) — no iota / off-diag masks needed:
    #   - no off-diagonal positive anywhere  <=>  max row-sum <= 1
    #   - every pair positive                <=>  min row-sum == n
    rowsum = jnp.sum(mask.astype(jnp.float32), axis=1, keepdims=True)  # (n, 1)
    has_pos = jnp.max(rowsum) > 1.0
    all_pos = jnp.min(rowsum) >= jnp.float32(n)
    valid = jnp.logical_and(has_pos, jnp.logical_not(all_pos))

    neg_inf = jnp.float32(-jnp.inf)
    pos_inf = jnp.float32(jnp.inf)

    # 4) Hard mining per anchor row on squared distances (diagonal included in
    #    positives, as in the reference: dist[i][mask[i]].max()). clamp/sqrt
    #    are monotone, so they are applied only to the reduced (n,1) vectors.
    d2_ap = jnp.max(jnp.where(mask, d2, neg_inf), axis=1, keepdims=True)
    d2_an = jnp.min(jnp.where(mask, pos_inf, d2), axis=1, keepdims=True)
    dist_ap = jnp.sqrt(jnp.maximum(d2_ap, 1e-12))                     # (n, 1)
    dist_an = jnp.sqrt(jnp.maximum(d2_an, 1e-12))                     # (n, 1)
    # TODO(synk): a row with zero negatives (while other rows still have
    # negatives) contributes 0 here; PyTorch raises on the empty min().

    # 5) MarginRankingLoss, y == 1: mean(max(0, -(dist_an - dist_ap) + margin))
    per_row = jnp.maximum(dist_ap - dist_an + jnp.float32(margin), 0.0)
    loss = jnp.sum(per_row) / jnp.float32(n)
    o_ref[0] = jnp.where(valid, loss, jnp.float32(0.0))


def triplet_loss(inputs, targets, margin=0.3):
    """inputs: (n, d) float (any dtype), targets: (n,) int labels -> scalar f32 loss."""
    n, d = inputs.shape
    t_col = targets.reshape(1, n).astype(jnp.int32)    # single label stream
    out = pl.pallas_call(
        functools.partial(_triplet_loss_kernel, margin=float(margin)),
        out_shape=jax.ShapeDtypeStruct((1,), jnp.float32),
        in_specs=[
            pl.BlockSpec((n, d), lambda: (0, 0)),      # native dtype, cast in-kernel
            pl.BlockSpec((1, n), lambda: (0, 0)),
        ],
        out_specs=pl.BlockSpec(memory_space=pltpu.SMEM),
    )(inputs, t_col)
    return out[0]


def _reference(inputs, targets, margin=0.3):
    """Pure-JAX reference mirroring the PyTorch forward (for sanity check)."""
    x = jnp.asarray(inputs, jnp.float32)
    n = x.shape[0]
    x = x / (jnp.linalg.norm(x, axis=-1, keepdims=True) + 1e-12)
    sq = jnp.sum(x * x, axis=1, keepdims=True)
    gram = jnp.dot(x, x.T, precision=lax.Precision.HIGHEST)
    d2 = sq + sq.T - 2.0 * gram
    dist = jnp.sqrt(jnp.maximum(d2, 1e-12))
    mask = targets[:, None] == targets[None, :]
    offdiag = ~jnp.eye(n, dtype=bool)
    has_pos = jnp.any(mask & offdiag)
    all_pos = jnp.all(mask)
    dist_ap = jnp.max(jnp.where(mask, dist, -jnp.inf), axis=1)
    dist_an = jnp.min(jnp.where(mask, jnp.inf, dist), axis=1)
    loss = jnp.mean(jnp.maximum(dist_ap - dist_an + margin, 0.0))
    return jnp.where(has_pos & ~all_pos, loss, 0.0)


if __name__ == "__main__":
    key = jax.random.PRNGKey(0)

    n, d = 8, 32                                  # batch_size, feat_dim
    inputs = jax.random.normal(key, (n, d), dtype=jnp.float32)
    # Every class has >= 2 members: neither degenerate early-exit gate trips
    # and every anchor has both an off-diagonal positive and a negative.
    targets = jnp.array([0, 1, 2, 0, 1, 2, 0, 1], dtype=jnp.int32)

    loss = triplet_loss(inputs, targets, margin=0.3)
    jax.block_until_ready(loss)

    ref = _reference(inputs, targets, margin=0.3)
    assert jnp.allclose(loss, ref, atol=1e-5, rtol=1e-5), (loss, ref)

    print("KERNEL_OK")
</pallas_src>

<mosaic_0001>
module attributes {stable_mosaic.version = 11 : i64} {
  func.func @_triplet_loss_kernel(%arg0: memref<8x32xf32, #tpu.memory_space<vmem>>, %arg1: memref<1x8xi32, #tpu.memory_space<vmem>>, %arg2: memref<1xf32, #tpu.memory_space<smem>>) attributes {dimension_semantics = [], scalar_prefetch = 0 : i64, scratch_operands = 0 : i64, tpu.core_type = #tpu.core_type<tc>} {
    %c0 = arith.constant 0 : index
    %c0_0 = arith.constant 0 : index
    %0 = vector.load %arg0[%c0, %c0_0] : memref<8x32xf32, #tpu.memory_space<vmem>>, vector<8x32xf32>
    %c0_1 = arith.constant 0 : index
    %c0_2 = arith.constant 0 : index
    %1 = vector.load %arg1[%c0_1, %c0_2] : memref<1x8xi32, #tpu.memory_space<vmem>>, vector<1x8xi32>
    %2 = arith.mulf %0, %0 : vector<8x32xf32>
    %cst = arith.constant dense<0.000000e+00> : vector<8xf32>
    %3 = vector.multi_reduction <add>, %2, %cst [1] : vector<8x32xf32> to vector<8xf32>
    %4 = vector.shape_cast %3 : vector<8xf32> to vector<8x1xf32>
    %5 = math.sqrt %4 : vector<8x1xf32>
    %cst_3 = arith.constant 9.99999996E-13 : f32
    %6 = vector.broadcast %cst_3 : f32 to vector<8x1xf32>
    %7 = arith.addf %5, %6 : vector<8x1xf32>
    %8 = tpu.reciprocal %7 : vector<8x1xf32> -> vector<8x1xf32>
    %9 = vector.broadcast %8 : vector<8x1xf32> to vector<8x32xf32>
    %10 = arith.mulf %0, %9 : vector<8x32xf32>
    %cst_4 = arith.constant dense<0.000000e+00> : vector<8x8xf32>
    %11 = tpu.matmul %10, %10, %cst_4 {dimension_numbers = #tpu.dot_dimension_numbers<[1], [1], [0], [0], [0, 0, 1, 0], [], []>} : vector<8x32xf32>, vector<8x32xf32>, vector<8x8xf32> -> vector<8x8xf32>
    %cst_5 = arith.constant 2.000000e+00 : f32
    %12 = vector.broadcast %cst_5 : f32 to vector<8x8xf32>
    %13 = arith.mulf %12, %11 : vector<8x8xf32>
    %cst_6 = arith.constant 2.000000e+00 : f32
    %14 = vector.broadcast %cst_6 : f32 to vector<8x8xf32>
    %15 = arith.subf %14, %13 : vector<8x8xf32>
    %16 = tpu.transpose %1, [1, 0] : vector<1x8xi32> -> vector<8x1xi32>
    %17 = vector.broadcast %16 : vector<8x1xi32> to vector<8x8xi32>
    %18 = vector.broadcast %1 : vector<1x8xi32> to vector<8x8xi32>
    %19 = arith.cmpi eq, %17, %18 : vector<8x8xi32>
    %20 = arith.extui %19 : vector<8x8xi1> to vector<8x8xi32>
    %21 = arith.sitofp %20 : vector<8x8xi32> to vector<8x8xf32>
    %cst_7 = arith.constant dense<0.000000e+00> : vector<8xf32>
    %22 = vector.multi_reduction <add>, %21, %cst_7 [1] : vector<8x8xf32> to vector<8xf32>
    %23 = vector.shape_cast %22 : vector<8xf32> to vector<8x1xf32>
    %24 = vector.shape_cast %23 : vector<8x1xf32> to vector<1x8x1xf32>
    %cst_8 = arith.constant dense<0xFF800000> : vector<1xf32>
    %25 = vector.multi_reduction <maximumf>, %24, %cst_8 [1, 2] : vector<1x8x1xf32> to vector<1xf32>
    %26 = vector.shape_cast %25 : vector<1xf32> to vector<1x1x1xf32>
    %27 = vector.extract %26[0, 0, 0] : f32 from vector<1x1x1xf32>
    %cst_9 = arith.constant 1.000000e+00 : f32
    %28 = arith.cmpf ogt, %27, %cst_9 : f32
    %29 = vector.shape_cast %23 : vector<8x1xf32> to vector<1x8x1xf32>
    %cst_10 = arith.constant dense<0x7F800000> : vector<1xf32>
    %30 = vector.multi_reduction <minimumf>, %29, %cst_10 [1, 2] : vector<1x8x1xf32> to vector<1xf32>
    %31 = vector.shape_cast %30 : vector<1xf32> to vector<1x1x1xf32>
    %32 = vector.extract %31[0, 0, 0] : f32 from vector<1x1x1xf32>
    %cst_11 = arith.constant 8.000000e+00 : f32
    %33 = arith.cmpf oge, %32, %cst_11 : f32
    %true = arith.constant true
    %34 = arith.xori %33, %true : i1
    %35 = arith.andi %28, %34 : i1
    %cst_12 = arith.constant 0xFF800000 : f32
    %36 = vector.broadcast %cst_12 : f32 to vector<8x8xf32>
    %37 = arith.select %19, %15, %36 : vector<8x8xi1>, vector<8x8xf32>
    %cst_13 = arith.constant dense<0xFF800000> : vector<8xf32>
    %38 = vector.multi_reduction <maximumf>, %37, %cst_13 [1] : vector<8x8xf32> to vector<8xf32>
    %39 = vector.shape_cast %38 : vector<8xf32> to vector<8x1xf32>
    %cst_14 = arith.constant 0x7F800000 : f32
    %40 = vector.broadcast %cst_14 : f32 to vector<8x8xf32>
    %41 = arith.select %19, %40, %15 : vector<8x8xi1>, vector<8x8xf32>
    %cst_15 = arith.constant dense<0x7F800000> : vector<8xf32>
    %42 = vector.multi_reduction <minimumf>, %41, %cst_15 [1] : vector<8x8xf32> to vector<8xf32>
    %43 = vector.shape_cast %42 : vector<8xf32> to vector<8x1xf32>
    %cst_16 = arith.constant 9.99999996E-13 : f32
    %44 = vector.broadcast %cst_16 : f32 to vector<8x1xf32>
    %45 = arith.maximumf %39, %44 : vector<8x1xf32>
    %46 = math.sqrt %45 : vector<8x1xf32>
    %cst_17 = arith.constant 9.99999996E-13 : f32
    %47 = vector.broadcast %cst_17 : f32 to vector<8x1xf32>
    %48 = arith.maximumf %43, %47 : vector<8x1xf32>
    %49 = math.sqrt %48 : vector<8x1xf32>
    %50 = arith.subf %46, %49 : vector<8x1xf32>
    %cst_18 = arith.constant 3.000000e-01 : f32
    %51 = vector.broadcast %cst_18 : f32 to vector<8x1xf32>
    %52 = arith.addf %50, %51 : vector<8x1xf32>
    %cst_19 = arith.constant 0.000000e+00 : f32
    %53 = vector.broadcast %cst_19 : f32 to vector<8x1xf32>
    %54 = arith.maximumf %52, %53 : vector<8x1xf32>
    %55 = vector.shape_cast %54 : vector<8x1xf32> to vector<1x8x1xf32>
    %cst_20 = arith.constant dense<0.000000e+00> : vector<1xf32>
    %56 = vector.multi_reduction <add>, %55, %cst_20 [1, 2] : vector<1x8x1xf32> to vector<1xf32>
    %57 = vector.shape_cast %56 : vector<1xf32> to vector<1x1x1xf32>
    %58 = vector.extract %57[0, 0, 0] : f32 from vector<1x1x1xf32>
    %cst_21 = arith.constant 8.000000e+00 : f32
    %59 = arith.divf %58, %cst_21 : f32
    %cst_22 = arith.constant 0.000000e+00 : f32
    %60 = arith.select %35, %59, %cst_22 : f32
    %c0_23 = arith.constant 0 : index
    %61 = memref.load %arg2[%c0_23] : memref<1xf32, #tpu.memory_space<smem>>
    memref.store %60, %arg2[%c0_23] : memref<1xf32, #tpu.memory_space<smem>>
    return
  }
}

</mosaic_0001>

<llo_original>
// kernel: tpu_custom_call.1
$region0: #{tpu_custom_call.1}
  #allocation0 [shape = 'u32[]', space=smem, size = 0x4, offset = 0x4, fixed_abs, tag = 'smem constant byte address 0x4 - core index']
  #allocation1 [shape = 'u32[144,128]{1,0:T(1,128)}', space=vmem, size = 0x12000, scoped, tag = 'internal scratch']
  %s0 = inlined_call_operand.hbm [shape: f32[8,32], index: 0, kind: input, shape index: {}]
  %s1 = inlined_call_operand.vmem [shape: s32[1,8], index: 1, kind: input, shape index: {}]
  %s2 = inlined_call_operand.hbm [shape: f32[1], index: 2, kind: output, shape index: {}]
  %s3 = sld [smem:[#allocation0]]
  $region22: #{tpu_custom_call.1} parent=0
    _
  %s5 = ssub.s32 1, %s3
  %s6 = scalar_select 0, %s5, %s3
  $region1: #{tpu_custom_call.1} parent=0
    #allocation2 [shape = 'u8[4096]{0}', space=vmem, size = 0x1000, scoped, tag = 'input window, operand 0, single buffered']
    #allocation3 [shape = 's32[1]{0}', space=sflag, size = 0x4, scoped, tag = 'scoped memory for tpu_custom_call.1']
    #allocation4 [shape = 's32[1]{0}', space=sflag, size = 0x4, scoped, tag = 'scoped memory for tpu_custom_call.1']
    #allocation5 [shape = 'u8[512]{0}', space=smem, size = 0x200, scoped, tag = 'output window, operand 0, single buffered']
    %7 = vsyncpa [#allocation3], 0
    %8 = vsyncpa [#allocation4], 0
    // Predicated region
    $region2: #{tpu_custom_call.1} parent=1 // pred_check
      _
    $region3: #{tpu_custom_call.1} parent=1 // pred_check_branch
      %10 = sbr.rel (0) target = $region5
    $region4: #{tpu_custom_call.1} parent=1 // pred_region
      %s12 = ssub.s32 128, 128
      %13 = vsyncadd [#allocation3], %s12
      %s15 = sshll.u32 [#allocation2], 4
      %s16 = int_to_ptr.vmem [resolvable:$true] %s15
      %18 = dma.hbm_to_vmem [thread:$0]  %s0, 128, %s16, [#allocation3]
    $region5: #{tpu_custom_call.1} parent=1 // pred_fallthru
      _
    // Predicated region
    $region6: #{tpu_custom_call.1} parent=1 // pred_check
      _
    $region7: #{tpu_custom_call.1} parent=1 // pred_check_branch
      %20 = sbr.rel (0) target = $region9
    $region8: #{tpu_custom_call.1} parent=1 // pred_region
      _
    $region9: #{tpu_custom_call.1} parent=1 // pred_fallthru
      _
    // Predicated region
    $region10: #{tpu_custom_call.1} parent=1 // pred_check
      _
    $region11: #{tpu_custom_call.1} parent=1 // pred_check_branch
      %22 = sbr.rel (0) target = $region13
    $region12: #{tpu_custom_call.1} parent=1 // pred_region
      %23 = dma.done [#allocation3], 128
    $region13: #{tpu_custom_call.1} parent=1 // pred_fallthru
      _
    %v24 = vld [vmem:[#allocation2] sm:$0xff]
    %v25 = vld [vmem:[%s1] sm:$0x1]
    %v26 = vmul.f32 %v24, %v24
    %vm27 = vcmask 261120
    %v28 = vsel %vm27, %v26, 0.0
    %29 = vadd.xlane.f32.xlu0 %v28
    %v30 = vpop.xlane.xlu0 %29
    %v31 = vrsqrt.pop %v30
    %v32 = vmul.f32 %v30, %v31
    %vm33 = vcmp.eq.f32.partialorder %v30, inf
    %v34 = vsel %vm33, %v30, %v32
    %vm35 = vcmp.eq.f32.partialorder %v30, 0.0
    %v36 = vand.u32 %v30, 2147483648
    %v37 = vsel %vm35, %v36, %v34
    %v38 = vadd.f32 %v37, 1e-12
    %v39 = vrcp.pop %v38
    %v40 = vmul.f32 %v24, %v39
    %v42 = vsel %vm27, %v40, 0
    %44 = vmatprep.subr.mxu0 0.0
    %45 = vmatpush1.xpose.msra.mxu0 %v42
    %46 = vmatprep.subr.mxu0 0.0
    %47 = vmatpush1.xpose.msra.mxu0 0.0
    %48 = vmatprep.subr.mxu0 0.0
    %49 = vmatpush1.xpose.msra.mxu0 0.0
    %50 = vmatprep.subr.mxu0 0.0
    %51 = vmatpush1.xpose.msra.mxu0 0.0
    %52 = vmatprep.subr.mxu0 0.0
    %53 = vmatpush1.xpose.msra.mxu0 0.0
    %54 = vmatprep.subr.mxu0 0.0
    %55 = vmatpush1.xpose.msra.mxu0 0.0
    %56 = vmatprep.subr.mxu0 0.0
    %57 = vmatpush1.xpose.msra.mxu0 0.0
    %58 = vmatprep.subr.mxu0 0.0
    %59 = vmatpush1.xpose.msra.mxu0 0.0
    %60 = vmatprep.subr.mxu0 0.0
    %61 = vmatpush1.xpose.msra.mxu0 0.0
    %62 = vmatprep.subr.mxu0 0.0
    %63 = vmatpush1.xpose.msra.mxu0 0.0
    %64 = vmatprep.subr.mxu0 0.0
    %65 = vmatpush1.xpose.msra.mxu0 0.0
    %66 = vmatprep.subr.mxu0 0.0
    %67 = vmatpush1.xpose.msra.mxu0 0.0
    %68 = vmatprep.subr.mxu0 0.0
    %69 = vmatpush1.xpose.msra.mxu0 0.0
    %70 = vmatprep.subr.mxu0 0.0
    %71 = vmatpush1.xpose.msra.mxu0 0.0
    %72 = vmatprep.subr.mxu0 0.0
    %73 = vmatpush1.xpose.msra.mxu0 0.0
    %74 = vmatprep.subr.mxu0 0.0
    %75 = vmatpush1.xpose.msra.mxu0 0.0
    %76 = vmatprep.subr.mxu0 0.0
    %77 = vmatpush1.xpose.msra.mxu0 0.0
    %78 = vmatprep.subr.mxu0 0.0
    %79 = vmatpush1.xpose.msra.mxu0 0.0
    %80 = vmatprep.subr.mxu0 0.0
    %81 = vmatpush1.xpose.msra.mxu0 0.0
    %82 = vmatprep.subr.mxu0 0.0
    %83 = vmatpush1.xpose.msra.mxu0 0.0
    %84 = vmatprep.subr.mxu0 0.0
    %85 = vmatpush1.xpose.msra.mxu0 0.0
    %86 = vmatprep.subr.mxu0 0.0
    %87 = vmatpush1.xpose.msra.mxu0 0.0
    %88 = vmatprep.subr.mxu0 0.0
    %89 = vmatpush1.xpose.msra.mxu0 0.0
    %90 = vmatprep.subr.mxu0 0.0
    %91 = vmatpush1.xpose.msra.mxu0 0.0
    %92 = vmatprep.subr.mxu0 0.0
    %93 = vmatpush1.xpose.msra.mxu0 0.0
    %94 = vmatprep.subr.mxu0 0.0
    %95 = vmatpush1.xpose.msra.mxu0 0.0
    %96 = vmatprep.subr.mxu0 0.0
    %97 = vmatpush1.xpose.msra.mxu0 0.0
    %98 = vmatprep.subr.mxu0 0.0
    %99 = vmatpush1.xpose.msra.mxu0 0.0
    %100 = vmatprep.subr.mxu0 0.0
    %101 = vmatpush1.xpose.msra.mxu0 0.0
    %102 = vmatprep.subr.mxu0 0.0
    %103 = vmatpush1.xpose.msra.mxu0 0.0
    %104 = vmatprep.subr.mxu0 0.0
    %105 = vmatpush1.xpose.msra.mxu0 0.0
    %106 = vmatprep.subr.mxu0 0.0
    %107 = vmatpush1.xpose.msra.mxu0 0.0
    %108 = vmatprep.mubr.f32.mxu0 0.0
    %109 = vmatmul.mubr.f32.gmra.mrb[0].mxu0 %v42
    %v110 = vpop.f32.mrb[0].mxu0
    %v111 = vadd.f32 0.0, %v110
    %v112 = vpop.f32.mrb[0].mxu0
    %113 = vdwg.mxu0
    %v114 = vmul.f32 %v111, 2.0
    %v115 = vsub.f32 2.0, %v114
    %116 = vxpose.xlu0.b32.start [1/16] %v25, 128
    %117 = vxpose.xlu0.b32.cont [2/16] 0, 128
    %118 = vxpose.xlu0.b32.cont [3/16] 0, 128
    %119 = vxpose.xlu0.b32.cont [4/16] 0, 128
    %120 = vxpose.xlu0.b32.cont [5/16] 0, 128
    %121 = vxpose.xlu0.b32.cont [6/16] 0, 128
    %122 = vxpose.xlu0.b32.cont [7/16] 0, 128
    %123 = vxpose.xlu0.b32.cont [8/16] 0, 128
    %124 = vxpose.xlu0.b32.cont [9/16] 0, 128
    %125 = vxpose.xlu0.b32.cont [10/16] 0, 128
    %126 = vxpose.xlu0.b32.cont [11/16] 0, 128
    %127 = vxpose.xlu0.b32.cont [12/16] 0, 128
    %128 = vxpose.xlu0.b32.cont [13/16] 0, 128
    %129 = vxpose.xlu0.b32.cont [14/16] 0, 128
    %130 = vxpose.xlu0.b32.cont [15/16] 0, 128
    %131 = vxpose.xlu0.b32.end [16/16] 0, 128
    %v132 = vpop.trf.xlu0
    %v133 = vpop.trf.xlu0
    %v134 = vpop.trf.xlu0
    %v135 = vpop.trf.xlu0
    %v136 = vpop.trf.xlu0
    %v137 = vpop.trf.xlu0
    %v138 = vpop.trf.xlu0
    %v139 = vpop.trf.xlu0
    %v140 = vpop.trf.xlu0
    %v141 = vpop.trf.xlu0
    %v142 = vpop.trf.xlu0
    %v143 = vpop.trf.xlu0
    %v144 = vpop.trf.xlu0
    %v145 = vpop.trf.xlu0
    %v146 = vpop.trf.xlu0
    %v147 = vpop.trf.xlu0
    %148 = vset.pattern.permute.xlu0 0
    %149 = vperm.xlu0 %148, %v132
    %v150 = vpop.permute.xlu0 %149
    %v151 = vlaneseq
    %v152 = vshrl.u32 %v151, 7
    %v153 = vsub.s32 0, %v152
    %v154 = vrot.slane %v25, %v153
    %vm155 = vcmp.eq.s32.totalorder %v150, %v154
    %v156 = vsel %vm155, 1, 0
    %v157 = vcvt.s32.f32 %v156
    %vm158 = vcmask 64512
    %v159 = vsel %vm158, %v157, 0.0
    %160 = vadd.xlane.f32.xlu0 %v159
    %v161 = vpop.xlane.xlu0 %160
    %v162 = vrot.slane %v161, 4
    %v163 = vmax.f32 %v161, %v162
    %v164 = vrot.slane %v163, 2
    %v165 = vmax.f32 %v163, %v164
    %v166 = vrot.slane %v165, 1
    %v167 = vmax.f32 %v165, %v166
    %s168 = vtos %v167
    %p169 = scmp.gt.f32.partialorder %s168, 1.0
    %v170 = vrot.slane %v161, 4
    %v171 = vmin.f32 %v161, %v170
    %v172 = vrot.slane %v171, 2
    %v173 = vmin.f32 %v171, %v172
    %v174 = vrot.slane %v173, 1
    %v175 = vmin.f32 %v173, %v174
    %s176 = vtos %v175
    %p177 = scmp.ge.f32.partialorder %s176, 8.0
    %p178 = pneg %p177
    %p179 = pnand %p169, %p178
    %p180 = pneg %p179
    %v181 = vsel %vm155, %v115, -inf
    %v182 = vsel %vm158, %v181, -inf
    %183 = vmax.xlane.f32.xlu0 %v182
    %v184 = vpop.xlane.xlu0 %183
    %v185 = vsel %vm155, inf, %v115
    %v186 = vsel %vm158, %v185, inf
    %187 = vmin.xlane.f32.xlu0 %v186
    %v188 = vpop.xlane.xlu0 %187
    %v189 = vmax.f32 %v184, 1e-12
    %v190 = vrsqrt.pop %v189
    %v191 = vmul.f32 %v189, %v190
    %vm192 = vcmp.eq.f32.partialorder %v189, inf
    %v193 = vsel %vm192, %v189, %v191
    %vm194 = vcmp.eq.f32.partialorder %v189, 0.0
    %v195 = vand.u32 %v189, 2147483648
    %v196 = vsel %vm194, %v195, %v193
    %v197 = vmax.f32 %v188, 1e-12
    %v198 = vrsqrt.pop %v197
    %v199 = vmul.f32 %v197, %v198
    %vm200 = vcmp.eq.f32.partialorder %v197, inf
    %v201 = vsel %vm200, %v197, %v199
    %vm202 = vcmp.eq.f32.partialorder %v197, 0.0
    %v203 = vand.u32 %v197, 2147483648
    %v204 = vsel %vm202, %v203, %v201
    %v205 = vsub.f32 %v196, %v204
    %v206 = vadd.f32 %v205, 0.3
    %v207 = vmax.f32 %v206, 0.0
    %vm208 = vcmask 7168
    %v209 = vsel %vm208, %v207, 0.0
    %210 = vadd.xlane.f32.xlu0 %v209
    %v211 = vpop.xlane.xlu0 %210
    %v212 = vrot.slane %v211, 4
    %v213 = vadd.f32 %v211, %v212
    %v214 = vrot.slane %v213, 2
    %v215 = vadd.f32 %v213, %v214
    %v216 = vrot.slane %v215, 1
    %v217 = vadd.f32 %v215, %v216
    %s218 = vtos %v217
    %v219 = vrcp.pop 8.0
    %s220 = vtos %v219
    %s221 = smul.f32 %s218, %s220
    %s222 = scalar_select %p180, %s221, 0.0
    %s223 = scalar_lea.smem [#allocation5], 0
    %224 = sst [smem:[%s223]] %s222
    // Predicated region
    $region14: #{tpu_custom_call.1} parent=1 // pred_check
      _
    $region15: #{tpu_custom_call.1} parent=1 // pred_check_branch
      %226 = sbr.rel (0) target = $region17
    $region16: #{tpu_custom_call.1} parent=1 // pred_region
      %s228 = ssub.s32 16, 16
      %229 = vsyncadd [#allocation4], %s228
      %232 = dma.smem_to_hbm [#allocation5], 16, %s2, [#allocation4]
    $region17: #{tpu_custom_call.1} parent=1 // pred_fallthru
      _
    // Predicated region
    $region18: #{tpu_custom_call.1} parent=1 // pred_check
      _
    $region19: #{tpu_custom_call.1} parent=1 // pred_check_branch
      %234 = sbr.rel (0) target = $region21
    $region20: #{tpu_custom_call.1} parent=1 // pred_region
      %235 = dma.done [#allocation4], 16
    $region21: #{tpu_custom_call.1} parent=1 // pred_fallthru
      _
    %236 = sfence
    %237 = vsyncpa [#allocation3], 1
    %238 = vsyncpa [#allocation4], 1

</llo_original>
